<compile_context>
chip_gen: v7x
topology: tpu7x:2x2x1
jax: 0.10.0
libtpu: 0.0.40
codegen_flags: <defaults>
</compile_context>

<pallas_src>
import functools

import jax
import jax.numpy as jnp
from jax.experimental import pallas as pl
from jax.experimental.pallas import tpu as pltpu


def _round_up(x, m):
    return ((x + m - 1) // m) * m


def soft_q_kernel(s_ref, a_ref, w1s_ref, w1a_ref, b1_ref, w2_ref, b2_ref,
                  w3_ref, b3_ref, o_ref):
    """One batch tile, batch-on-lanes.

    s_ref:   (num_inputs, tb)     a_ref: (num_actions, tb)
    w1s_ref: (H, num_inputs)      w1a_ref: (H, num_actions)   b1_ref: (H, 1)
    w2_ref:  (H, H)               b2_ref: (H, 1)
    w3_ref:  (1, H)               b3_ref: (1, 1)
    o_ref:   (1, tb)  -- lane-dense output slab.
    """
    # Layer 1: fused concat -> two matmuls into the same (H, tb) accumulator.
    h1 = (jnp.dot(w1s_ref[...], s_ref[...], preferred_element_type=jnp.float32)
          + jnp.dot(w1a_ref[...], a_ref[...], preferred_element_type=jnp.float32)
          + b1_ref[...])
    h1 = jnp.maximum(h1, 0.0)                                    # (H, tb)

    # Layer 2.
    h2 = jnp.dot(w2_ref[...], h1, preferred_element_type=jnp.float32) + b2_ref[...]
    h2 = jnp.maximum(h2, 0.0)                                    # (H, tb)

    # Head: (1, H) @ (H, tb) -> lane-dense (1, tb) row, stored unmasked.
    q = jnp.dot(w3_ref[...], h2, preferred_element_type=jnp.float32) + b3_ref[...]
    o_ref[...] = q.astype(o_ref.dtype)


@functools.partial(jax.jit, static_argnames=("block_b",))
def soft_q_forward(state, action, params, *, block_b=2048):
    """state: [B, num_inputs], action: [B, num_actions] -> q: [B, 1]."""
    w1, b1, w2, b2, w3, b3 = params
    B, num_inputs = state.shape
    num_actions = action.shape[1]
    H = w1.shape[1]
    assert w1.shape[0] == num_inputs + num_actions, (
        "W1 rows must follow [state, action] concat order")

    # Transpose to batch-on-lanes and split W1 so the concat never materializes.
    w1s_t = w1[:num_inputs].T          # (H, num_inputs)
    w1a_t = w1[num_inputs:].T          # (H, num_actions)
    b1_t = b1.reshape(H, 1)
    w2_t = w2.T                        # (H, H)
    b2_t = b2.reshape(H, 1)
    w3_t = w3.T                        # (1, H)
    b3_t = b3.reshape(1, 1)

    # Batch tile: multiple of 128 lanes.  If the batch spans >1 lane-tile, cap
    # the tile near ceil(B/2) so the parallel grid has >= 2 steps (v7x: 2 TCs).
    LANES = 128
    b_lane = _round_up(B, LANES)
    tb = min(_round_up(block_b, LANES), b_lane)
    if b_lane > LANES:
        half = _round_up(pl.cdiv(B, 2), LANES)
        tb = min(tb, max(half, LANES))
    b_pad = _round_up(B, tb)

    state_t = state.T                  # (num_inputs, B)
    action_t = action.T                # (num_actions, B)
    if b_pad != B:
        pad = b_pad - B
        state_t = jnp.pad(state_t, ((0, 0), (0, pad)))
        action_t = jnp.pad(action_t, ((0, 0), (0, pad)))
    grid = (b_pad // tb,)

    # Advisory cost so XLA can schedule around this small custom call.
    flops = 2 * b_pad * (num_inputs * H + num_actions * H + H * H + H)
    bytes_accessed = 4 * (
        b_pad * (num_inputs + num_actions + 1)          # activations in/out
        + (num_inputs + num_actions) * H + H * H + H    # weights
        + 2 * H + 1)                                    # biases
    cost = pl.CostEstimate(flops=flops, transcendentals=0,
                           bytes_accessed=bytes_accessed)

    # Activation tiles march along the lane (batch) axis; weights/biases use
    # constant index_maps so they are DMA'd once and stay resident in VMEM.
    act_spec = lambda feat: pl.BlockSpec((feat, tb), lambda i: (0, i))
    const_spec = lambda shape: pl.BlockSpec(shape, lambda i: (0, 0))

    out = pl.pallas_call(
        soft_q_kernel,
        out_shape=jax.ShapeDtypeStruct((1, b_pad), jnp.float32),
        grid_spec=pltpu.PrefetchScalarGridSpec(
            num_scalar_prefetch=0,
            grid=grid,
            in_specs=[
                act_spec(num_inputs),            # state^T tile
                act_spec(num_actions),           # action^T tile
                const_spec((H, num_inputs)),     # W1_s^T
                const_spec((H, num_actions)),    # W1_a^T
                const_spec((H, 1)),              # b1
                const_spec((H, H)),              # W2^T
                const_spec((H, 1)),              # b2
                const_spec((1, H)),              # W3^T
                const_spec((1, 1)),              # b3
            ],
            out_specs=pl.BlockSpec((1, tb), lambda i: (0, i)),
        ),
        compiler_params=pltpu.CompilerParams(
            dimension_semantics=("parallel",)),
        cost_estimate=cost,
    )(state_t, action_t, w1s_t, w1a_t, b1_t, w2_t, b2_t, w3_t, b3_t)

    # Padded batch lanes carry relu-of-bias garbage; they are dropped here.
    return out[0, :B].reshape(B, 1)


def init_params(key, num_inputs, num_actions, hidden_size, init_w=0.003):
    """Deterministic synthetic init matching the PyTorch module's shapes."""
    in_dim = num_inputs + num_actions
    k1, k2, k3, k4, k5, k6 = jax.random.split(key, 6)

    def lin_init(kw, kb, fan_in, fan_out):
        # PyTorch nn.Linear default: U(-1/sqrt(fan_in), 1/sqrt(fan_in))
        bound = 1.0 / jnp.sqrt(jnp.float32(fan_in))
        w = jax.random.uniform(kw, (fan_in, fan_out), jnp.float32, -bound, bound)
        b = jax.random.uniform(kb, (1, fan_out), jnp.float32, -bound, bound)
        return w, b

    w1, b1 = lin_init(k1, k2, in_dim, hidden_size)
    w2, b2 = lin_init(k3, k4, hidden_size, hidden_size)
    # linear3: uniform_(-init_w, init_w) as in the module __init__
    w3 = jax.random.uniform(k5, (hidden_size, 1), jnp.float32, -init_w, init_w)
    b3 = jax.random.uniform(k6, (1, 1), jnp.float32, -init_w, init_w)
    return (w1, b1, w2, b2, w3, b3)


def soft_q_reference(state, action, params):
    w1, b1, w2, b2, w3, b3 = params
    x = jnp.concatenate([state, action], axis=1)
    x = jax.nn.relu(x @ w1 + b1)
    x = jax.nn.relu(x @ w2 + b2)
    return x @ w3 + b3


if __name__ == "__main__":
    num_inputs, num_actions, hidden_size = 8, 4, 32

    key = jax.random.PRNGKey(0)
    k_params, k_state, k_action = jax.random.split(key, 3)
    params = init_params(k_params, num_inputs, num_actions, hidden_size)

    # Small test: single 128-lane tile.
    batch = 8
    state = jax.random.normal(k_state, (batch, num_inputs), jnp.float32)
    action = jax.random.normal(k_action, (batch, num_actions), jnp.float32)
    q = jax.block_until_ready(soft_q_forward(state, action, params))
    q_ref = soft_q_reference(state, action, params)
    assert q.shape == (batch, 1)
    assert jnp.allclose(q, q_ref, atol=1e-5, rtol=1e-5)

    # Multi-tile test: exercises the batch grid, lane padding, the >=2-step
    # split for v7x, and the resident weights.
    batch2 = 300
    k_s2, k_a2 = jax.random.split(jax.random.PRNGKey(1))
    state2 = jax.random.normal(k_s2, (batch2, num_inputs), jnp.float32)
    action2 = jax.random.normal(k_a2, (batch2, num_actions), jnp.float32)
    q2 = jax.block_until_ready(soft_q_forward(state2, action2, params))
    q2_ref = soft_q_reference(state2, action2, params)
    assert q2.shape == (batch2, 1)
    assert jnp.allclose(q2, q2_ref, atol=1e-5, rtol=1e-5)

    print("KERNEL_OK")
</pallas_src>

<mosaic_0001>
module attributes {stable_mosaic.version = 11 : i64} {
  func.func @soft_q_kernel(%arg0: i32, %arg1: memref<8x128xf32, #tpu.memory_space<vmem>>, %arg2: memref<4x128xf32, #tpu.memory_space<vmem>>, %arg3: memref<32x8xf32, #tpu.memory_space<vmem>>, %arg4: memref<32x4xf32, #tpu.memory_space<vmem>>, %arg5: memref<32x1xf32, #tpu.memory_space<vmem>>, %arg6: memref<32x32xf32, #tpu.memory_space<vmem>>, %arg7: memref<32x1xf32, #tpu.memory_space<vmem>>, %arg8: memref<1x32xf32, #tpu.memory_space<vmem>>, %arg9: memref<1x1xf32, #tpu.memory_space<vmem>>, %arg10: memref<1x128xf32, #tpu.memory_space<vmem>>) attributes {dimension_semantics = [#tpu.dimension_semantics<parallel>], iteration_bounds = array<i64: 1>, scalar_prefetch = 0 : i64, scratch_operands = 0 : i64, tpu.core_type = #tpu.core_type<tc>, window_params = [{transform_indices = @transform_0, window_bounds = array<i64: 8, 128>}, {transform_indices = @transform_1, window_bounds = array<i64: 4, 128>}, {pipeline_mode = #tpu.pipeline_mode<synchronous>, transform_indices = @transform_2, window_bounds = array<i64: 32, 8>}, {pipeline_mode = #tpu.pipeline_mode<synchronous>, transform_indices = @transform_3, window_bounds = array<i64: 32, 4>}, {pipeline_mode = #tpu.pipeline_mode<synchronous>, transform_indices = @transform_4, window_bounds = array<i64: 32, 1>}, {pipeline_mode = #tpu.pipeline_mode<synchronous>, transform_indices = @transform_5, window_bounds = array<i64: 32, 32>}, {pipeline_mode = #tpu.pipeline_mode<synchronous>, transform_indices = @transform_6, window_bounds = array<i64: 32, 1>}, {pipeline_mode = #tpu.pipeline_mode<synchronous>, transform_indices = @transform_7, window_bounds = array<i64: 1, 32>}, {pipeline_mode = #tpu.pipeline_mode<synchronous>, transform_indices = @transform_8, window_bounds = array<i64: 1, 1>}, {transform_indices = @transform_9, window_bounds = array<i64: 1, 128>}]} {
    %c0 = arith.constant 0 : index
    %c0_0 = arith.constant 0 : index
    %0 = vector.load %arg3[%c0, %c0_0] : memref<32x8xf32, #tpu.memory_space<vmem>>, vector<32x8xf32>
    %c0_1 = arith.constant 0 : index
    %c0_2 = arith.constant 0 : index
    %1 = vector.load %arg1[%c0_1, %c0_2] : memref<8x128xf32, #tpu.memory_space<vmem>>, vector<8x128xf32>
    %cst = arith.constant dense<0.000000e+00> : vector<32x128xf32>
    %2 = tpu.matmul %0, %1, %cst {dimension_numbers = #tpu.dot_dimension_numbers<[1], [0], [0], [1], [0, 0, 1, 1], [], []>} : vector<32x8xf32>, vector<8x128xf32>, vector<32x128xf32> -> vector<32x128xf32>
    %c0_3 = arith.constant 0 : index
    %c0_4 = arith.constant 0 : index
    %3 = vector.load %arg4[%c0_3, %c0_4] : memref<32x4xf32, #tpu.memory_space<vmem>>, vector<32x4xf32>
    %c0_5 = arith.constant 0 : index
    %c0_6 = arith.constant 0 : index
    %4 = vector.load %arg2[%c0_5, %c0_6] : memref<4x128xf32, #tpu.memory_space<vmem>>, vector<4x128xf32>
    %cst_7 = arith.constant dense<0.000000e+00> : vector<32x128xf32>
    %5 = tpu.matmul %3, %4, %cst_7 {dimension_numbers = #tpu.dot_dimension_numbers<[1], [0], [0], [1], [0, 0, 1, 1], [], []>} : vector<32x4xf32>, vector<4x128xf32>, vector<32x128xf32> -> vector<32x128xf32>
    %6 = arith.addf %2, %5 : vector<32x128xf32>
    %c0_8 = arith.constant 0 : index
    %c0_9 = arith.constant 0 : index
    %7 = vector.load %arg5[%c0_8, %c0_9] : memref<32x1xf32, #tpu.memory_space<vmem>>, vector<32x1xf32>
    %8 = vector.broadcast %7 : vector<32x1xf32> to vector<32x128xf32>
    %9 = arith.addf %6, %8 : vector<32x128xf32>
    %cst_10 = arith.constant 0.000000e+00 : f32
    %10 = vector.broadcast %cst_10 : f32 to vector<32x128xf32>
    %11 = arith.maximumf %9, %10 : vector<32x128xf32>
    %c0_11 = arith.constant 0 : index
    %c0_12 = arith.constant 0 : index
    %12 = vector.load %arg6[%c0_11, %c0_12] : memref<32x32xf32, #tpu.memory_space<vmem>>, vector<32x32xf32>
    %cst_13 = arith.constant dense<0.000000e+00> : vector<32x128xf32>
    %13 = tpu.matmul %12, %11, %cst_13 {dimension_numbers = #tpu.dot_dimension_numbers<[1], [0], [0], [1], [0, 0, 1, 1], [], []>} : vector<32x32xf32>, vector<32x128xf32>, vector<32x128xf32> -> vector<32x128xf32>
    %c0_14 = arith.constant 0 : index
    %c0_15 = arith.constant 0 : index
    %14 = vector.load %arg7[%c0_14, %c0_15] : memref<32x1xf32, #tpu.memory_space<vmem>>, vector<32x1xf32>
    %15 = vector.broadcast %14 : vector<32x1xf32> to vector<32x128xf32>
    %16 = arith.addf %13, %15 : vector<32x128xf32>
    %cst_16 = arith.constant 0.000000e+00 : f32
    %17 = vector.broadcast %cst_16 : f32 to vector<32x128xf32>
    %18 = arith.maximumf %16, %17 : vector<32x128xf32>
    %c0_17 = arith.constant 0 : index
    %c0_18 = arith.constant 0 : index
    %19 = vector.load %arg8[%c0_17, %c0_18] : memref<1x32xf32, #tpu.memory_space<vmem>>, vector<1x32xf32>
    %cst_19 = arith.constant dense<0.000000e+00> : vector<1x128xf32>
    %20 = tpu.matmul %19, %18, %cst_19 {dimension_numbers = #tpu.dot_dimension_numbers<[1], [0], [0], [1], [0, 0, 1, 1], [], []>} : vector<1x32xf32>, vector<32x128xf32>, vector<1x128xf32> -> vector<1x128xf32>
    %c0_20 = arith.constant 0 : index
    %c0_21 = arith.constant 0 : index
    %21 = vector.load %arg9[%c0_20, %c0_21] : memref<1x1xf32, #tpu.memory_space<vmem>>, vector<1x1xf32>
    %22 = vector.broadcast %21 : vector<1x1xf32> to vector<1x128xf32>
    %23 = arith.addf %20, %22 : vector<1x128xf32>
    %c0_22 = arith.constant 0 : index
    %c0_23 = arith.constant 0 : index
    %24 = vector.load %arg10[%c0_22, %c0_23] : memref<1x128xf32, #tpu.memory_space<vmem>>, vector<1x128xf32>
    tpu.vector_store %arg10[%c0_22, %c0_23], %23 {strides = array<i32>} : memref<1x128xf32, #tpu.memory_space<vmem>>, vector<1x128xf32>,
    return
  }
  func.func @transform_0(%arg0: i32) -> (i32, i32) {
    %c0_i32 = arith.constant 0 : i32
    %c0_i32_0 = arith.constant 0 : i32
    return %c0_i32, %arg0 : i32, i32
  }
  func.func @transform_1(%arg0: i32) -> (i32, i32) {
    %c0_i32 = arith.constant 0 : i32
    %c0_i32_0 = arith.constant 0 : i32
    return %c0_i32, %arg0 : i32, i32
  }
  func.func @transform_2(%arg0: i32) -> (i32, i32) {
    %c0_i32 = arith.constant 0 : i32
    %c0_i32_0 = arith.constant 0 : i32
    %c0_i32_1 = arith.constant 0 : i32
    return %c0_i32, %c0_i32_0 : i32, i32
  }
  func.func @transform_3(%arg0: i32) -> (i32, i32) {
    %c0_i32 = arith.constant 0 : i32
    %c0_i32_0 = arith.constant 0 : i32
    %c0_i32_1 = arith.constant 0 : i32
    return %c0_i32, %c0_i32_0 : i32, i32
  }
  func.func @transform_4(%arg0: i32) -> (i32, i32) {
    %c0_i32 = arith.constant 0 : i32
    %c0_i32_0 = arith.constant 0 : i32
    %c0_i32_1 = arith.constant 0 : i32
    return %c0_i32, %c0_i32_0 : i32, i32
  }
  func.func @transform_5(%arg0: i32) -> (i32, i32) {
    %c0_i32 = arith.constant 0 : i32
    %c0_i32_0 = arith.constant 0 : i32
    %c0_i32_1 = arith.constant 0 : i32
    return %c0_i32, %c0_i32_0 : i32, i32
  }
  func.func @transform_6(%arg0: i32) -> (i32, i32) {
    %c0_i32 = arith.constant 0 : i32
    %c0_i32_0 = arith.constant 0 : i32
    %c0_i32_1 = arith.constant 0 : i32
    return %c0_i32, %c0_i32_0 : i32, i32
  }
  func.func @transform_7(%arg0: i32) -> (i32, i32) {
    %c0_i32 = arith.constant 0 : i32
    %c0_i32_0 = arith.constant 0 : i32
    %c0_i32_1 = arith.constant 0 : i32
    return %c0_i32, %c0_i32_0 : i32, i32
  }
  func.func @transform_8(%arg0: i32) -> (i32, i32) {
    %c0_i32 = arith.constant 0 : i32
    %c0_i32_0 = arith.constant 0 : i32
    %c0_i32_1 = arith.constant 0 : i32
    return %c0_i32, %c0_i32_0 : i32, i32
  }
  func.func @transform_9(%arg0: i32) -> (i32, i32) {
    %c0_i32 = arith.constant 0 : i32
    %c0_i32_0 = arith.constant 0 : i32
    return %c0_i32, %arg0 : i32, i32
  }
}

</mosaic_0001>

<llo_original>
// kernel: soft_q_forward.1
$region0: #{soft_q_forward.1}
  #allocation0 [shape = 'u32[]', space=smem, size = 0x4, offset = 0x4, fixed_abs, tag = 'smem constant byte address 0x4 - core index']
  #allocation1 [shape = 'u32[144,128]{1,0:T(1,128)}', space=vmem, size = 0x12000, scoped, tag = 'internal scratch']
  #allocation2 [shape = 'f32[1,1]{1,0:T(1,128)S(1)}', space=vmem, size = 0x200, scoped, tag = 'scoped memory for soft_q_forward.1']
  %s0 = inlined_call_operand.vmem [shape: f32[8,128], index: 0, kind: input, shape index: {}]
  %s1 = inlined_call_operand.vmem [shape: f32[4,128], index: 1, kind: input, shape index: {}]
  %s2 = inlined_call_operand.vmem [shape: f32[32,8], index: 2, kind: input, shape index: {}]
  %s3 = inlined_call_operand.vmem [shape: f32[32,4], index: 3, kind: input, shape index: {}]
  %s4 = inlined_call_operand.vmem [shape: f32[32,1], index: 4, kind: input, shape index: {}]
  %s5 = inlined_call_operand.vmem [shape: f32[32,32], index: 5, kind: input, shape index: {}]
  %s6 = inlined_call_operand.vmem [shape: f32[32,1], index: 6, kind: input, shape index: {}]
  %s7 = inlined_call_operand.vmem [shape: f32[1,32], index: 7, kind: input, shape index: {}]
  %s8 = inlined_call_operand.<no memory space> [shape: f32[1,1], index: 8, kind: input, shape index: {}]
  %s9 = inlined_call_operand.vmem [shape: f32[1,128], index: 9, kind: output, shape index: {}]
  %s10 = sld [smem:[#allocation0]]
  $region46: #{soft_q_forward.1} parent=0
    _
  %s12 = ssub.s32 1, %s10
  %s13 = scalar_select 0, %s12, %s10
  %v14 = vstv %s8
  %15 = vst [vmem:[#allocation2] sm:$0x1] %v14
  // Predicated region
  $region2: #{soft_q_forward.1} parent=0 // pred_check
    _
  $region3: #{soft_q_forward.1} parent=0 // pred_check_branch
    %17 = sbr.rel (0) target = $region5
  $region4: #{soft_q_forward.1} parent=0 // pred_region
    _
  $region5: #{soft_q_forward.1} parent=0 // pred_fallthru
    _
  // Predicated region
  $region6: #{soft_q_forward.1} parent=0 // pred_check
    _
  $region7: #{soft_q_forward.1} parent=0 // pred_check_branch
    %19 = sbr.rel (0) target = $region9
  $region8: #{soft_q_forward.1} parent=0 // pred_region
    _
  $region9: #{soft_q_forward.1} parent=0 // pred_fallthru
    _
  // Predicated region
  $region10: #{soft_q_forward.1} parent=0 // pred_check
    _
  $region11: #{soft_q_forward.1} parent=0 // pred_check_branch
    %21 = sbr.rel (0) target = $region13
  $region12: #{soft_q_forward.1} parent=0 // pred_region
    _
  $region13: #{soft_q_forward.1} parent=0 // pred_fallthru
    _
  // Predicated region
  $region14: #{soft_q_forward.1} parent=0 // pred_check
    _
  $region15: #{soft_q_forward.1} parent=0 // pred_check_branch
    %23 = sbr.rel (0) target = $region17
  $region16: #{soft_q_forward.1} parent=0 // pred_region
    _
  $region17: #{soft_q_forward.1} parent=0 // pred_fallthru
    _
  // Predicated region
  $region18: #{soft_q_forward.1} parent=0 // pred_check
    _
  $region19: #{soft_q_forward.1} parent=0 // pred_check_branch
    %25 = sbr.rel (0) target = $region21
  $region20: #{soft_q_forward.1} parent=0 // pred_region
    _
  $region21: #{soft_q_forward.1} parent=0 // pred_fallthru
    _
  // Predicated region
  $region22: #{soft_q_forward.1} parent=0 // pred_check
    _
  $region23: #{soft_q_forward.1} parent=0 // pred_check_branch
    %27 = sbr.rel (0) target = $region25
  $region24: #{soft_q_forward.1} parent=0 // pred_region
    _
  $region25: #{soft_q_forward.1} parent=0 // pred_fallthru
    _
  // Predicated region
  $region26: #{soft_q_forward.1} parent=0 // pred_check
    _
  $region27: #{soft_q_forward.1} parent=0 // pred_check_branch
    %29 = sbr.rel (0) target = $region29
  $region28: #{soft_q_forward.1} parent=0 // pred_region
    _
  $region29: #{soft_q_forward.1} parent=0 // pred_fallthru
    _
  // Predicated region
  $region30: #{soft_q_forward.1} parent=0 // pred_check
    _
  $region31: #{soft_q_forward.1} parent=0 // pred_check_branch
    %31 = sbr.rel (0) target = $region33
  $region32: #{soft_q_forward.1} parent=0 // pred_region
    _
  $region33: #{soft_q_forward.1} parent=0 // pred_fallthru
    _
  // Predicated region
  $region34: #{soft_q_forward.1} parent=0 // pred_check
    _
  $region35: #{soft_q_forward.1} parent=0 // pred_check_branch
    %33 = sbr.rel (0) target = $region37
  $region36: #{soft_q_forward.1} parent=0 // pred_region
    _
  $region37: #{soft_q_forward.1} parent=0 // pred_fallthru
    _
  %v34 = vld [vmem:[%s2] sm:$0xff]
  %v35 = vld [vmem:[%s2 + $0x8] sm:$0xff]
  %v36 = vld [vmem:[%s2 + $0x10] sm:$0xff]
  %v37 = vld [vmem:[%s2 + $0x18] sm:$0xff]
  %v38 = vld [vmem:[%s0] sm:$0xff]
  %v39 = vld [vmem:[%s3] sm:$0xff]
  %v40 = vld [vmem:[%s3 + $0x8] sm:$0xff]
  %v41 = vld [vmem:[%s3 + $0x10] sm:$0xff]
  %v42 = vld [vmem:[%s3 + $0x18] sm:$0xff]
  %v43 = vld [vmem:[%s1] sm:$0xf]
  %vm44 = vcmask 31744
  %v46 = vsel %vm44, %v39, 0
  %v49 = vsel %vm44, %v40, 0
  %v52 = vsel %vm44, %v41, 0
  %v55 = vsel %vm44, %v42, 0
  %vm57 = vcmask 1043456
  %v59 = vsel %vm57, %v43, 0
  %61 = vmatprep.subr.mxu0 0.0
  %62 = vmatpush1.msra.mxu0 %v59
  %63 = vmatprep.subr.mxu0 0.0
  %64 = vmatpush1.msra.mxu0 0.0
  %65 = vmatprep.subr.mxu0 0.0
  %66 = vmatpush1.msra.mxu0 0.0
  %67 = vmatprep.subr.mxu0 0.0
  %68 = vmatpush1.msra.mxu0 0.0
  %69 = vmatprep.subr.mxu0 0.0
  %70 = vmatpush1.msra.mxu0 0.0
  %71 = vmatprep.subr.mxu0 0.0
  %72 = vmatpush1.msra.mxu0 0.0
  %73 = vmatprep.subr.mxu0 0.0
  %74 = vmatpush1.msra.mxu0 0.0
  %75 = vmatprep.subr.mxu0 0.0
  %76 = vmatpush1.msra.mxu0 0.0
  %77 = vmatprep.subr.mxu0 0.0
  %78 = vmatpush1.msra.mxu0 0.0
  %79 = vmatprep.subr.mxu0 0.0
  %80 = vmatpush1.msra.mxu0 0.0
  %81 = vmatprep.subr.mxu0 0.0
  %82 = vmatpush1.msra.mxu0 0.0
  %83 = vmatprep.subr.mxu0 0.0
  %84 = vmatpush1.msra.mxu0 0.0
  %85 = vmatprep.subr.mxu0 0.0
  %86 = vmatpush1.msra.mxu0 0.0
  %87 = vmatprep.subr.mxu0 0.0
  %88 = vmatpush1.msra.mxu0 0.0
  %89 = vmatprep.subr.mxu0 0.0
  %90 = vmatpush1.msra.mxu0 0.0
  %91 = vmatprep.subr.mxu0 0.0
  %92 = vmatpush1.msra.mxu0 0.0
  %93 = vmatprep.subr.mxu0 0.0
  %94 = vmatpush1.msra.mxu0 0.0
  %95 = vmatprep.subr.mxu0 0.0
  %96 = vmatpush1.msra.mxu0 0.0
  %97 = vmatprep.subr.mxu0 0.0
  %98 = vmatpush1.msra.mxu0 0.0
  %99 = vmatprep.subr.mxu0 0.0
  %100 = vmatpush1.msra.mxu0 0.0
  %101 = vmatprep.subr.mxu0 0.0
  %102 = vmatpush1.msra.mxu0 0.0
  %103 = vmatprep.subr.mxu0 0.0
  %104 = vmatpush1.msra.mxu0 0.0
  %105 = vmatprep.subr.mxu0 0.0
  %106 = vmatpush1.msra.mxu0 0.0
  %107 = vmatprep.subr.mxu0 0.0
  %108 = vmatpush1.msra.mxu0 0.0
  %109 = vmatprep.subr.mxu0 0.0
  %110 = vmatpush1.msra.mxu0 0.0
  %111 = vmatprep.subr.mxu0 0.0
  %112 = vmatpush1.msra.mxu0 0.0
  %113 = vmatprep.subr.mxu0 0.0
  %114 = vmatpush1.msra.mxu0 0.0
  %115 = vmatprep.subr.mxu0 0.0
  %116 = vmatpush1.msra.mxu0 0.0
  %117 = vmatprep.subr.mxu0 0.0
  %118 = vmatpush1.msra.mxu0 0.0
  %119 = vmatprep.subr.mxu0 0.0
  %120 = vmatpush1.msra.mxu0 0.0
  %121 = vmatprep.subr.mxu0 0.0
  %122 = vmatpush1.msra.mxu0 0.0
  %123 = vmatprep.subr.mxu0 0.0
  %124 = vmatpush1.msra.mxu0 0.0
  %125 = vmatprep.mubr.f32.mxu0 0.0
  %126 = vmatmul.mubr.f32.gmra.mrb[0].mxu0 %v46
  %v127 = vpop.f32.mrb[0].mxu0
  %v128 = vadd.f32 0.0, %v127
  %v129 = vpop.f32.mrb[0].mxu0
  %130 = vmatprep.mubr.f32.mxu0 0.0
  %131 = vmatmul.mubr.f32.gmra.mrb[0].mxu0 %v49
  %v132 = vpop.f32.mrb[0].mxu0
  %v133 = vadd.f32 0.0, %v132
  %v134 = vpop.f32.mrb[0].mxu0
  %135 = vmatprep.mubr.f32.mxu0 0.0
  %136 = vmatmul.mubr.f32.gmra.mrb[0].mxu0 %v52
  %v137 = vpop.f32.mrb[0].mxu0
  %v138 = vadd.f32 0.0, %v137
  %v139 = vpop.f32.mrb[0].mxu0
  %140 = vmatprep.mubr.f32.mxu0 0.0
  %141 = vmatmul.mubr.f32.gmra.mrb[0].mxu0 %v55
  %v142 = vpop.f32.mrb[0].mxu0
  %v143 = vadd.f32 0.0, %v142
  %v144 = vpop.f32.mrb[0].mxu0
  %145 = vdwg.mxu0
  %vm146 = vcmask 64512
  %v148 = vsel %vm146, %v34, 0
  %v151 = vsel %vm146, %v35, 0
  %v154 = vsel %vm146, %v36, 0
  %v157 = vsel %vm146, %v37, 0
  %159 = vmatprep.subr.mxu0 0.0
  %160 = vmatpush1.msra.mxu0 %v38
  %161 = vmatprep.subr.mxu0 0.0
  %162 = vmatpush1.msra.mxu0 0.0
  %163 = vmatprep.subr.mxu0 0.0
  %164 = vmatpush1.msra.mxu0 0.0
  %165 = vmatprep.subr.mxu0 0.0
  %166 = vmatpush1.msra.mxu0 0.0
  %167 = vmatprep.subr.mxu0 0.0
  %168 = vmatpush1.msra.mxu0 0.0
  %169 = vmatprep.subr.mxu0 0.0
  %170 = vmatpush1.msra.mxu0 0.0
  %171 = vmatprep.subr.mxu0 0.0
  %172 = vmatpush1.msra.mxu0 0.0
  %173 = vmatprep.subr.mxu0 0.0
  %174 = vmatpush1.msra.mxu0 0.0
  %175 = vmatprep.subr.mxu0 0.0
  %176 = vmatpush1.msra.mxu0 0.0
  %177 = vmatprep.subr.mxu0 0.0
  %178 = vmatpush1.msra.mxu0 0.0
  %179 = vmatprep.subr.mxu0 0.0
  %180 = vmatpush1.msra.mxu0 0.0
  %181 = vmatprep.subr.mxu0 0.0
  %182 = vmatpush1.msra.mxu0 0.0
  %183 = vmatprep.subr.mxu0 0.0
  %184 = vmatpush1.msra.mxu0 0.0
  %185 = vmatprep.subr.mxu0 0.0
  %186 = vmatpush1.msra.mxu0 0.0
  %187 = vmatprep.subr.mxu0 0.0
  %188 = vmatpush1.msra.mxu0 0.0
  %189 = vmatprep.subr.mxu0 0.0
  %190 = vmatpush1.msra.mxu0 0.0
  %191 = vmatprep.subr.mxu0 0.0
  %192 = vmatpush1.msra.mxu0 0.0
  %193 = vmatprep.subr.mxu0 0.0
  %194 = vmatpush1.msra.mxu0 0.0
  %195 = vmatprep.subr.mxu0 0.0
  %196 = vmatpush1.msra.mxu0 0.0
  %197 = vmatprep.subr.mxu0 0.0
  %198 = vmatpush1.msra.mxu0 0.0
  %199 = vmatprep.subr.mxu0 0.0
  %200 = vmatpush1.msra.mxu0 0.0
  %201 = vmatprep.subr.mxu0 0.0
  %202 = vmatpush1.msra.mxu0 0.0
  %203 = vmatprep.subr.mxu0 0.0
  %204 = vmatpush1.msra.mxu0 0.0
  %205 = vmatprep.subr.mxu0 0.0
  %206 = vmatpush1.msra.mxu0 0.0
  %207 = vmatprep.subr.mxu0 0.0
  %208 = vmatpush1.msra.mxu0 0.0
  %209 = vmatprep.subr.mxu0 0.0
  %210 = vmatpush1.msra.mxu0 0.0
  %211 = vmatprep.subr.mxu0 0.0
  %212 = vmatpush1.msra.mxu0 0.0
  %213 = vmatprep.subr.mxu0 0.0
  %214 = vmatpush1.msra.mxu0 0.0
  %215 = vmatprep.subr.mxu0 0.0
  %216 = vmatpush1.msra.mxu0 0.0
  %217 = vmatprep.subr.mxu0 0.0
  %218 = vmatpush1.msra.mxu0 0.0
  %219 = vmatprep.subr.mxu0 0.0
  %220 = vmatpush1.msra.mxu0 0.0
  %221 = vmatprep.subr.mxu0 0.0
  %222 = vmatpush1.msra.mxu0 0.0
  %223 = vmatprep.mubr.f32.mxu0 0.0
  %224 = vmatmul.mubr.f32.gmra.mrb[0].mxu0 %v148
  %v225 = vpop.f32.mrb[0].mxu0
  %v226 = vadd.f32 %v128, %v225
  %v227 = vpop.f32.mrb[0].mxu0
  %228 = vmatprep.mubr.f32.mxu0 0.0
  %229 = vmatmul.mubr.f32.gmra.mrb[0].mxu0 %v151
  %v230 = vpop.f32.mrb[0].mxu0
  %v231 = vadd.f32 %v133, %v230
  %v232 = vpop.f32.mrb[0].mxu0
  %233 = vmatprep.mubr.f32.mxu0 0.0
  %234 = vmatmul.mubr.f32.gmra.mrb[0].mxu0 %v154
  %v235 = vpop.f32.mrb[0].mxu0
  %v236 = vadd.f32 %v138, %v235
  %v237 = vpop.f32.mrb[0].mxu0
  %238 = vmatprep.mubr.f32.mxu0 0.0
  %239 = vmatmul.mubr.f32.gmra.mrb[0].mxu0 %v157
  %v240 = vpop.f32.mrb[0].mxu0
  %v241 = vadd.f32 %v143, %v240
  %v242 = vpop.f32.mrb[0].mxu0
  %243 = vdwg.mxu0
  %v244 = vld [vmem:[%s4] sm:$0xff]
  %v245 = vld [vmem:[%s4 + $0x8] sm:$0xff]
  %v246 = vld [vmem:[%s4 + $0x10] sm:$0xff]
  %v247 = vld [vmem:[%s4 + $0x18] sm:$0xff]
  %249 = vset.pattern.permute.xlu0 0
  %250 = vperm.xlu0 %249, %v244
  %v251 = vpop.permute.xlu0 %250
  %254 = vset.pattern.permute.xlu0 0
  %255 = vperm.xlu0 %254, %v245
  %v256 = vpop.permute.xlu0 %255
  %259 = vset.pattern.permute.xlu0 0
  %260 = vperm.xlu0 %259, %v246
  %v261 = vpop.permute.xlu0 %260
  %264 = vset.pattern.permute.xlu0 0
  %265 = vperm.xlu0 %264, %v247
  %v266 = vpop.permute.xlu0 %265
  %v268 = vadd.f32 %v226, %v251
  %v269 = vadd.f32 %v231, %v256
  %v270 = vadd.f32 %v236, %v261
  %v271 = vadd.f32 %v241, %v266
  %v272 = vmax.f32 %v268, 0.0
  %v273 = vmax.f32 %v269, 0.0
  %v274 = vmax.f32 %v270, 0.0
  %v275 = vmax.f32 %v271, 0.0
  %v276 = vld [vmem:[%s5] sm:$0xff]
  %v277 = vld [vmem:[%s5 + $0x8] sm:$0xff]
  %v278 = vld [vmem:[%s5 + $0x10] sm:$0xff]
  %v279 = vld [vmem:[%s5 + $0x18] sm:$0xff]
  %v280 = vld [vmem:[%s6] sm:$0xff]
  %v281 = vld [vmem:[%s6 + $0x8] sm:$0xff]
  %v282 = vld [vmem:[%s6 + $0x10] sm:$0xff]
  %v283 = vld [vmem:[%s6 + $0x18] sm:$0xff]
  %285 = vset.pattern.permute.xlu0 0
  %286 = vperm.xlu0 %285, %v280
  %v287 = vpop.permute.xlu0 %286
  %290 = vset.pattern.permute.xlu0 0
  %291 = vperm.xlu0 %290, %v281
  %v292 = vpop.permute.xlu0 %291
  %295 = vset.pattern.permute.xlu0 0
  %296 = vperm.xlu0 %295, %v282
  %v297 = vpop.permute.xlu0 %296
  %300 = vset.pattern.permute.xlu0 0
  %301 = vperm.xlu0 %300, %v283
  %v302 = vpop.permute.xlu0 %301
  %vm304 = vcmask 261120
  %v306 = vsel %vm304, %v276, 0
  %v309 = vsel %vm304, %v277, 0
  %v312 = vsel %vm304, %v278, 0
  %v315 = vsel %vm304, %v279, 0
  %317 = vmatprep.subr.mxu0 0.0
  %318 = vmatpush1.msra.mxu0 %v272
  %319 = vmatprep.subr.mxu0 0.0
  %320 = vmatpush1.msra.mxu0 %v273
  %321 = vmatprep.subr.mxu0 0.0
  %322 = vmatpush1.msra.mxu0 %v274
  %323 = vmatprep.subr.mxu0 0.0
  %324 = vmatpush1.msra.mxu0 %v275
  %325 = vmatprep.subr.mxu0 0.0
  %326 = vmatpush1.msra.mxu0 0.0
  %327 = vmatprep.subr.mxu0 0.0
  %328 = vmatpush1.msra.mxu0 0.0
  %329 = vmatprep.subr.mxu0 0.0
  %330 = vmatpush1.msra.mxu0 0.0
  %331 = vmatprep.subr.mxu0 0.0
  %332 = vmatpush1.msra.mxu0 0.0
  %333 = vmatprep.subr.mxu0 0.0
  %334 = vmatpush1.msra.mxu0 0.0
  %335 = vmatprep.subr.mxu0 0.0
  %336 = vmatpush1.msra.mxu0 0.0
  %337 = vmatprep.subr.mxu0 0.0
  %338 = vmatpush1.msra.mxu0 0.0
  %339 = vmatprep.subr.mxu0 0.0
  %340 = vmatpush1.msra.mxu0 0.0
  %341 = vmatprep.subr.mxu0 0.0
  %342 = vmatpush1.msra.mxu0 0.0
  %343 = vmatprep.subr.mxu0 0.0
  %344 = vmatpush1.msra.mxu0 0.0
  %345 = vmatprep.subr.mxu0 0.0
  %346 = vmatpush1.msra.mxu0 0.0
  %347 = vmatprep.subr.mxu0 0.0
  %348 = vmatpush1.msra.mxu0 0.0
  %349 = vmatprep.subr.mxu0 0.0
  %350 = vmatpush1.msra.mxu0 0.0
  %351 = vmatprep.subr.mxu0 0.0
  %352 = vmatpush1.msra.mxu0 0.0
  %353 = vmatprep.subr.mxu0 0.0
  %354 = vmatpush1.msra.mxu0 0.0
  %355 = vmatprep.subr.mxu0 0.0
  %356 = vmatpush1.msra.mxu0 0.0
  %357 = vmatprep.subr.mxu0 0.0
  %358 = vmatpush1.msra.mxu0 0.0
  %359 = vmatprep.subr.mxu0 0.0
  %360 = vmatpush1.msra.mxu0 0.0
  %361 = vmatprep.subr.mxu0 0.0
  %362 = vmatpush1.msra.mxu0 0.0
  %363 = vmatprep.subr.mxu0 0.0
  %364 = vmatpush1.msra.mxu0 0.0
  %365 = vmatprep.subr.mxu0 0.0
  %366 = vmatpush1.msra.mxu0 0.0
  %367 = vmatprep.subr.mxu0 0.0
  %368 = vmatpush1.msra.mxu0 0.0
  %369 = vmatprep.subr.mxu0 0.0
  %370 = vmatpush1.msra.mxu0 0.0
  %371 = vmatprep.subr.mxu0 0.0
  %372 = vmatpush1.msra.mxu0 0.0
  %373 = vmatprep.subr.mxu0 0.0
  %374 = vmatpush1.msra.mxu0 0.0
  %375 = vmatprep.subr.mxu0 0.0
  %376 = vmatpush1.msra.mxu0 0.0
  %377 = vmatprep.subr.mxu0 0.0
  %378 = vmatpush1.msra.mxu0 0.0
  %379 = vmatprep.subr.mxu0 0.0
  %380 = vmatpush1.msra.mxu0 0.0
  %381 = vmatprep.mubr.f32.mxu0 0.0
  %382 = vmatmul.mubr.f32.gmra.mrb[0].mxu0 %v306
  %v383 = vpop.f32.mrb[0].mxu0
  %v384 = vadd.f32 %v287, %v383
  %v385 = vpop.f32.mrb[0].mxu0
  %386 = vmatprep.mubr.f32.mxu0 0.0
  %387 = vmatmul.mubr.f32.gmra.mrb[0].mxu0 %v309
  %v388 = vpop.f32.mrb[0].mxu0
  %v389 = vadd.f32 %v292, %v388
  %v390 = vpop.f32.mrb[0].mxu0
  %391 = vmatprep.mubr.f32.mxu0 0.0
  %392 = vmatmul.mubr.f32.gmra.mrb[0].mxu0 %v312
  %v393 = vpop.f32.mrb[0].mxu0
  %v394 = vadd.f32 %v297, %v393
  %v395 = vpop.f32.mrb[0].mxu0
  %396 = vmatprep.mubr.f32.mxu0 0.0
  %397 = vmatmul.mubr.f32.gmra.mrb[0].mxu0 %v315
  %v398 = vpop.f32.mrb[0].mxu0
  %v399 = vadd.f32 %v302, %v398
  %v400 = vpop.f32.mrb[0].mxu0
  %401 = vdwg.mxu0
  %v402 = vmax.f32 %v384, 0.0
  %v403 = vmax.f32 %v389, 0.0
  %v404 = vmax.f32 %v394, 0.0
  %v405 = vmax.f32 %v399, 0.0
  %v406 = vld [vmem:[%s7] sm:$0x1]
  %v407 = vld [vmem:[#allocation2] sm:$0x1]
  %409 = vset.pattern.permute.xlu0 0
  %410 = vperm.xlu0 %409, %v407
  %v411 = vpop.permute.xlu0 %410
  %v413 = vlaneseq
  %v414 = vshrl.u32 %v413, 7
  %v415 = vsub.s32 0, %v414
  %v416 = vrot.slane %v411, %v415
  %v418 = vsel %vm304, %v406, 0
  %420 = vmatprep.subr.mxu0 0.0
  %421 = vmatpush1.msra.mxu0 %v402
  %422 = vmatprep.subr.mxu0 0.0
  %423 = vmatpush1.msra.mxu0 %v403
  %424 = vmatprep.subr.mxu0 0.0
  %425 = vmatpush1.msra.mxu0 %v404
  %426 = vmatprep.subr.mxu0 0.0
  %427 = vmatpush1.msra.mxu0 %v405
  %428 = vmatprep.subr.mxu0 0.0
  %429 = vmatpush1.msra.mxu0 0.0
  %430 = vmatprep.subr.mxu0 0.0
  %431 = vmatpush1.msra.mxu0 0.0
  %432 = vmatprep.subr.mxu0 0.0
  %433 = vmatpush1.msra.mxu0 0.0
  %434 = vmatprep.subr.mxu0 0.0
  %435 = vmatpush1.msra.mxu0 0.0
  %436 = vmatprep.subr.mxu0 0.0
  %437 = vmatpush1.msra.mxu0 0.0
  %438 = vmatprep.subr.mxu0 0.0
  %439 = vmatpush1.msra.mxu0 0.0
  %440 = vmatprep.subr.mxu0 0.0
  %441 = vmatpush1.msra.mxu0 0.0
  %442 = vmatprep.subr.mxu0 0.0
  %443 = vmatpush1.msra.mxu0 0.0
  %444 = vmatprep.subr.mxu0 0.0
  %445 = vmatpush1.msra.mxu0 0.0
  %446 = vmatprep.subr.mxu0 0.0
  %447 = vmatpush1.msra.mxu0 0.0
  %448 = vmatprep.subr.mxu0 0.0
  %449 = vmatpush1.msra.mxu0 0.0
  %450 = vmatprep.subr.mxu0 0.0
  %451 = vmatpush1.msra.mxu0 0.0
  %452 = vmatprep.subr.mxu0 0.0
  %453 = vmatpush1.msra.mxu0 0.0
  %454 = vmatprep.subr.mxu0 0.0
  %455 = vmatpush1.msra.mxu0 0.0
  %456 = vmatprep.subr.mxu0 0.0
  %457 = vmatpush1.msra.mxu0 0.0
  %458 = vmatprep.subr.mxu0 0.0
  %459 = vmatpush1.msra.mxu0 0.0
  %460 = vmatprep.subr.mxu0 0.0
  %461 = vmatpush1.msra.mxu0 0.0
  %462 = vmatprep.subr.mxu0 0.0
  %463 = vmatpush1.msra.mxu0 0.0
  %464 = vmatprep.subr.mxu0 0.0
  %465 = vmatpush1.msra.mxu0 0.0
  %466 = vmatprep.subr.mxu0 0.0
  %467 = vmatpush1.msra.mxu0 0.0
  %468 = vmatprep.subr.mxu0 0.0
  %469 = vmatpush1.msra.mxu0 0.0
  %470 = vmatprep.subr.mxu0 0.0
  %471 = vmatpush1.msra.mxu0 0.0
  %472 = vmatprep.subr.mxu0 0.0
  %473 = vmatpush1.msra.mxu0 0.0
  %474 = vmatprep.subr.mxu0 0.0
  %475 = vmatpush1.msra.mxu0 0.0
  %476 = vmatprep.subr.mxu0 0.0
  %477 = vmatpush1.msra.mxu0 0.0
  %478 = vmatprep.subr.mxu0 0.0
  %479 = vmatpush1.msra.mxu0 0.0
  %480 = vmatprep.subr.mxu0 0.0
  %481 = vmatpush1.msra.mxu0 0.0
  %482 = vmatprep.subr.mxu0 0.0
  %483 = vmatpush1.msra.mxu0 0.0
  %484 = vmatprep.mubr.f32.mxu0 0.0
  %485 = vmatmul.mubr.f32.gmra.mrb[0].mxu0 %v418
  %v486 = vpop.f32.mrb[0].mxu0
  %v487 = vadd.f32 %v416, %v486
  %v488 = vpop.f32.mrb[0].mxu0
  %489 = vdwg.mxu0
  %490 = vst [vmem:[%s9] sm:$0x1] %v487
  // Predicated region
  $region38: #{soft_q_forward.1} parent=0 // pred_check
    _
  $region39: #{soft_q_forward.1} parent=0 // pred_check_branch
    %492 = sbr.rel (0) target = $region41
  $region40: #{soft_q_forward.1} parent=0 // pred_region
    _
  $region41: #{soft_q_forward.1} parent=0 // pred_fallthru
    _
  // Predicated region
  $region42: #{soft_q_forward.1} parent=0 // pred_check
    _
  $region43: #{soft_q_forward.1} parent=0 // pred_check_branch
    %494 = sbr.rel (0) target = $region45
  $region44: #{soft_q_forward.1} parent=0 // pred_region
    _
  $region45: #{soft_q_forward.1} parent=0 // pred_fallthru
    _

</llo_original>
